<compile_context>
chip_gen: v7x
topology: tpu7x:2x2x1
jax: 0.10.0
libtpu: 0.0.40
codegen_flags: <defaults>
</compile_context>

<pallas_src>
import jax
import jax.numpy as jnp
from jax.experimental import pallas as pl
from jax.experimental.pallas import tpu as pltpu

LANES = 128
SAMPLES_PER_ROW = LANES // 2          # 64 samples per 128-lane row (2 features each)
MAX_BLOCK_ROWS = 4096                 # (4096,128) f32 = 2 MiB/block; 8 MiB dbl-buffered in+out
MIN_GRID_STEPS = 4                    # keep >= 2 (ideally 4+) steps so v7x shards over both TCs


def nn1relu_kernel(p_ref, x_ref, o_ref):
    """p_ref: SMEM (12,) f32 = [w0 (4, row-major), b0 (2), w1 (4, row-major), b1 (2)].
    x_ref / o_ref: VMEM (S, 128) blocks; lane 2k = feature 0, lane 2k+1 = feature 1
    of sample (64*row + k)."""
    x = x_ref[...]                                             # (S, 128)

    lane = jax.lax.broadcasted_iota(jnp.int32, (1, LANES), 1)  # 2-D iota (TPU req.)
    is_f0 = (lane & 1) == 0                                    # even lane -> feature 0

    def pair_swap(v):
        # Swap adjacent (even, odd) lane pairs: lane 2k <-> lane 2k+1.
        # roll by LANES-1 == roll by -1  -> lane l sees v[l+1]
        nxt = pltpu.roll(v, LANES - 1, 1)
        # roll by 1                      -> lane l sees v[l-1]
        prv = pltpu.roll(v, 1, 1)
        return jnp.where(is_f0, nxt, prv)

    # Lane-alternating weight constants (one (1,128) row each, built per step).
    a_own = jnp.where(is_f0, p_ref[0], p_ref[3])     # w0[0,0] / w0[1,1]
    a_sw = jnp.where(is_f0, p_ref[2], p_ref[1])      # w0[1,0] / w0[0,1]
    b_vec = jnp.where(is_f0, p_ref[4], p_ref[5])     # b0[0]   / b0[1]
    c_own = jnp.where(is_f0, p_ref[6], p_ref[9])     # w1[0,0] / w1[1,1]
    c_sw = jnp.where(is_f0, p_ref[8], p_ref[7])      # w1[1,0] / w1[0,1]
    d_vec = jnp.where(is_f0, p_ref[10], p_ref[11])   # b1[0]   / b1[1]

    # ---- linear_0 + ReLU (VPU only; rolls go to the XLU slot) ----
    h = a_own * x + a_sw * pair_swap(x) + b_vec
    h = jnp.maximum(h, 0.0)

    # ---- linear_1 ----
    y = c_own * h + c_sw * pair_swap(h) + d_vec

    o_ref[...] = y.astype(o_ref.dtype)               # single lane-dense store


def _round_up(n, m):
    return ((n + m - 1) // m) * m


def _block_rows(total_rows):
    """Pick the sublane-row tile: big (VMEM-budgeted), multiple of 8, >= MIN_GRID_STEPS steps."""
    if total_rows <= 8:
        return total_rows             # block dim == full array dim -> always legal
    rows = max(8, pl.cdiv(total_rows, MIN_GRID_STEPS))
    return min(MAX_BLOCK_ROWS, _round_up(rows, 8))


def nn1relu_forward(x, w0, b0, w1, b1):
    """x: (B, 2); w0, w1: (2, 2) stored (in, out); b0, b1: (1, 2)."""
    B, din = x.shape
    assert din == 2 and w0.shape == (2, 2) and w1.shape == (2, 2)

    # Pack all parameters into one flat f32 array (single SMEM input).
    params = jnp.concatenate(
        [w0.reshape(-1), b0.reshape(-1), w1.reshape(-1), b1.reshape(-1)]
    ).astype(jnp.float32)                                      # (12,)

    # Native-layout view: (B, 2) -> (B//64, 128). Contiguous, so this is
    # metadata-only; a copy (pad) only happens when B % 64 != 0.
    padded_b = _round_up(B, SAMPLES_PER_ROW)
    xp = x if padded_b == B else jnp.pad(x, ((0, padded_b - B), (0, 0)))
    rows = padded_b // SAMPLES_PER_ROW
    x_rows = xp.reshape(rows, LANES)

    s = _block_rows(rows)
    grid = (pl.cdiv(rows, s),)        # non-divisible last block handled by Pallas masking

    out_rows = pl.pallas_call(
        nn1relu_kernel,
        out_shape=jax.ShapeDtypeStruct((rows, LANES), x.dtype),
        grid=grid,
        in_specs=[
            # All 12 scalars in SMEM: one input, no per-step VMEM weight DMA streams.
            pl.BlockSpec(memory_space=pltpu.MemorySpace.SMEM),
            # Activations: (S, 128) block, lane- AND sublane-dense.
            pl.BlockSpec((s, LANES), lambda i: (i, 0)),
        ],
        out_specs=pl.BlockSpec((s, LANES), lambda i: (i, 0)),
        compiler_params=pltpu.CompilerParams(
            dimension_semantics=("parallel",),   # v7x: shard batch grid over 2 TCs
        ),
    )(params, x_rows)

    out = out_rows.reshape(padded_b, 2)           # metadata-only
    return out if padded_b == B else out[:B]


def init_params(key):
    # Mirrors the homework LinearLayer init: U(-1/sqrt(dim_in), 1/sqrt(dim_in))
    # for both weights (dim_in, dim_out) and biases. Deterministic via PRNGKey.
    k0w, k0b, k1w, k1b = jax.random.split(key, 4)
    bound = 1.0 / jnp.sqrt(2.0)                   # dim_in = 2 for both layers
    w0 = jax.random.uniform(k0w, (2, 2), jnp.float32, -bound, bound)
    b0 = jax.random.uniform(k0b, (1, 2), jnp.float32, -bound, bound)
    w1 = jax.random.uniform(k1w, (2, 2), jnp.float32, -bound, bound)
    b1 = jax.random.uniform(k1b, (1, 2), jnp.float32, -bound, bound)
    return w0, b0, w1, b1


if __name__ == "__main__":
    key = jax.random.PRNGKey(0)
    kx1, kx2, kp = jax.random.split(key, 3)
    w0, b0, w1, b1 = init_params(kp)

    def ref_fn(x):
        # Reference in plain JAX (same math, outside the kernel).
        return jnp.maximum(x @ w0 + b0, 0.0) @ w1 + b1

    # Spec-scale batch (exercises the pad-to-64 path, single tiny block).
    x_small = jax.random.normal(kx1, (8, 2), dtype=jnp.float32)
    out_small = jax.block_until_ready(nn1relu_forward(x_small, w0, b0, w1, b1))
    assert out_small.shape == (8, 2)
    assert jnp.allclose(out_small, ref_fn(x_small), atol=1e-5, rtol=1e-5)

    # Multi-step grid with a partial last block (no padding, zero extra copies).
    x_big = jax.random.normal(kx2, (2560, 2), dtype=jnp.float32)
    out_big = jax.block_until_ready(nn1relu_forward(x_big, w0, b0, w1, b1))
    assert out_big.shape == (2560, 2)
    assert jnp.allclose(out_big, ref_fn(x_big), atol=1e-5, rtol=1e-5)

    print("KERNEL_OK")
</pallas_src>

<mosaic_0001>
module attributes {stable_mosaic.version = 11 : i64} {
  func.func @nn1relu_kernel(%arg0: i32, %arg1: memref<12xf32, #tpu.memory_space<smem>>, %arg2: memref<1x128xf32, #tpu.memory_space<vmem>>, %arg3: memref<1x128xf32, #tpu.memory_space<vmem>>) attributes {dimension_semantics = [#tpu.dimension_semantics<parallel>], iteration_bounds = array<i64: 1>, scalar_prefetch = 0 : i64, scratch_operands = 0 : i64, tpu.core_type = #tpu.core_type<tc>, window_params = [{transform_indices = @transform_0, window_bounds = array<i64: 12>}, {transform_indices = @transform_1, window_bounds = array<i64: 1, 128>}, {transform_indices = @transform_2, window_bounds = array<i64: 1, 128>}]} {
    %c0 = arith.constant 0 : index
    %c0_0 = arith.constant 0 : index
    %0 = vector.load %arg2[%c0, %c0_0] : memref<1x128xf32, #tpu.memory_space<vmem>>, vector<1x128xf32>
    %1 = tpu.iota {dimensions = array<i32: 1>} : vector<1x128xi32>
    %c1_i32 = arith.constant 1 : i32
    %2 = vector.broadcast %c1_i32 : i32 to vector<1x128xi32>
    %3 = arith.andi %1, %2 : vector<1x128xi32>
    %c0_i32 = arith.constant 0 : i32
    %4 = vector.broadcast %c0_i32 : i32 to vector<1x128xi32>
    %5 = arith.cmpi eq, %3, %4 : vector<1x128xi32>
    %c0_1 = arith.constant 0 : index
    %6 = memref.load %arg1[%c0_1] : memref<12xf32, #tpu.memory_space<smem>>
    %c3 = arith.constant 3 : index
    %7 = memref.load %arg1[%c3] : memref<12xf32, #tpu.memory_space<smem>>
    %8 = vector.broadcast %6 : f32 to vector<1x128xf32>
    %9 = vector.broadcast %7 : f32 to vector<1x128xf32>
    %10 = arith.select %5, %8, %9 : vector<1x128xi1>, vector<1x128xf32>
    %c2 = arith.constant 2 : index
    %11 = memref.load %arg1[%c2] : memref<12xf32, #tpu.memory_space<smem>>
    %c1 = arith.constant 1 : index
    %12 = memref.load %arg1[%c1] : memref<12xf32, #tpu.memory_space<smem>>
    %13 = vector.broadcast %11 : f32 to vector<1x128xf32>
    %14 = vector.broadcast %12 : f32 to vector<1x128xf32>
    %15 = arith.select %5, %13, %14 : vector<1x128xi1>, vector<1x128xf32>
    %c4 = arith.constant 4 : index
    %16 = memref.load %arg1[%c4] : memref<12xf32, #tpu.memory_space<smem>>
    %c5 = arith.constant 5 : index
    %17 = memref.load %arg1[%c5] : memref<12xf32, #tpu.memory_space<smem>>
    %18 = vector.broadcast %16 : f32 to vector<1x128xf32>
    %19 = vector.broadcast %17 : f32 to vector<1x128xf32>
    %20 = arith.select %5, %18, %19 : vector<1x128xi1>, vector<1x128xf32>
    %c6 = arith.constant 6 : index
    %21 = memref.load %arg1[%c6] : memref<12xf32, #tpu.memory_space<smem>>
    %c9 = arith.constant 9 : index
    %22 = memref.load %arg1[%c9] : memref<12xf32, #tpu.memory_space<smem>>
    %23 = vector.broadcast %21 : f32 to vector<1x128xf32>
    %24 = vector.broadcast %22 : f32 to vector<1x128xf32>
    %25 = arith.select %5, %23, %24 : vector<1x128xi1>, vector<1x128xf32>
    %c8 = arith.constant 8 : index
    %26 = memref.load %arg1[%c8] : memref<12xf32, #tpu.memory_space<smem>>
    %c7 = arith.constant 7 : index
    %27 = memref.load %arg1[%c7] : memref<12xf32, #tpu.memory_space<smem>>
    %28 = vector.broadcast %26 : f32 to vector<1x128xf32>
    %29 = vector.broadcast %27 : f32 to vector<1x128xf32>
    %30 = arith.select %5, %28, %29 : vector<1x128xi1>, vector<1x128xf32>
    %c10 = arith.constant 10 : index
    %31 = memref.load %arg1[%c10] : memref<12xf32, #tpu.memory_space<smem>>
    %c11 = arith.constant 11 : index
    %32 = memref.load %arg1[%c11] : memref<12xf32, #tpu.memory_space<smem>>
    %33 = vector.broadcast %31 : f32 to vector<1x128xf32>
    %34 = vector.broadcast %32 : f32 to vector<1x128xf32>
    %35 = arith.select %5, %33, %34 : vector<1x128xi1>, vector<1x128xf32>
    %36 = arith.mulf %10, %0 : vector<1x128xf32>
    %c127_i32 = arith.constant 127 : i32
    %37 = tpu.dynamic_rotate %0 by %c127_i32 dim 1 : vector<1x128xf32>, i32 -> vector<1x128xf32>
    %c1_i32_2 = arith.constant 1 : i32
    %38 = tpu.dynamic_rotate %0 by %c1_i32_2 dim 1 : vector<1x128xf32>, i32 -> vector<1x128xf32>
    %39 = arith.select %5, %37, %38 : vector<1x128xi1>, vector<1x128xf32>
    %40 = arith.mulf %15, %39 : vector<1x128xf32>
    %41 = arith.addf %36, %40 : vector<1x128xf32>
    %42 = arith.addf %41, %20 : vector<1x128xf32>
    %cst = arith.constant 0.000000e+00 : f32
    %43 = vector.broadcast %cst : f32 to vector<1x128xf32>
    %44 = arith.maximumf %42, %43 : vector<1x128xf32>
    %45 = arith.mulf %25, %44 : vector<1x128xf32>
    %c127_i32_3 = arith.constant 127 : i32
    %46 = tpu.dynamic_rotate %44 by %c127_i32_3 dim 1 : vector<1x128xf32>, i32 -> vector<1x128xf32>
    %c1_i32_4 = arith.constant 1 : i32
    %47 = tpu.dynamic_rotate %44 by %c1_i32_4 dim 1 : vector<1x128xf32>, i32 -> vector<1x128xf32>
    %48 = arith.select %5, %46, %47 : vector<1x128xi1>, vector<1x128xf32>
    %49 = arith.mulf %30, %48 : vector<1x128xf32>
    %50 = arith.addf %45, %49 : vector<1x128xf32>
    %51 = arith.addf %50, %35 : vector<1x128xf32>
    %c0_5 = arith.constant 0 : index
    %c0_6 = arith.constant 0 : index
    %52 = vector.load %arg3[%c0_5, %c0_6] : memref<1x128xf32, #tpu.memory_space<vmem>>, vector<1x128xf32>
    tpu.vector_store %arg3[%c0_5, %c0_6], %51 {strides = array<i32>} : memref<1x128xf32, #tpu.memory_space<vmem>>, vector<1x128xf32>,
    return
  }
  func.func @transform_0(%arg0: i32) -> i32 {
    %c0_i32 = arith.constant 0 : i32
    %c0_i32_0 = arith.constant 0 : i32
    return %c0_i32 : i32
  }
  func.func @transform_1(%arg0: i32) -> (i32, i32) {
    %c0_i32 = arith.constant 0 : i32
    %c0_i32_0 = arith.constant 0 : i32
    return %arg0, %c0_i32 : i32, i32
  }
  func.func @transform_2(%arg0: i32) -> (i32, i32) {
    %c0_i32 = arith.constant 0 : i32
    %c0_i32_0 = arith.constant 0 : i32
    return %arg0, %c0_i32 : i32, i32
  }
}

</mosaic_0001>

<llo_original>
// kernel: tpu_custom_call.1
$region0: #{tpu_custom_call.1}
  #allocation0 [shape = 'u32[]', space=smem, size = 0x4, offset = 0x4, fixed_abs, tag = 'smem constant byte address 0x4 - core index']
  #allocation1 [shape = 'u32[144,128]{1,0:T(1,128)}', space=vmem, size = 0x12000, scoped, tag = 'internal scratch']
  %s0 = inlined_call_operand.hbm [shape: f32[12], index: 0, kind: input, shape index: {}]
  %s1 = inlined_call_operand.vmem [shape: f32[1,128], index: 1, kind: input, shape index: {}]
  %s2 = inlined_call_operand.hbm [shape: f32[1,128], index: 2, kind: output, shape index: {}]
  %s3 = sld [smem:[#allocation0]]
  $region22: #{tpu_custom_call.1} parent=0
    _
  %s5 = ssub.s32 1, %s3
  %s6 = scalar_select 0, %s5, %s3
  $region1: #{tpu_custom_call.1} parent=0
    #allocation2 [shape = 'u8[512]{0}', space=smem, size = 0x200, scoped, tag = 'input window, operand 0, single buffered']
    #allocation3 [shape = 's32[1]{0}', space=sflag, size = 0x4, scoped, tag = 'scoped memory for tpu_custom_call.1']
    #allocation4 [shape = 's32[1]{0}', space=sflag, size = 0x4, scoped, tag = 'scoped memory for tpu_custom_call.1']
    #allocation5 [shape = 'u8[512]{0}', space=vmem, size = 0x400, scoped, tag = 'output window, operand 0, single buffered']
    %7 = vsyncpa [#allocation4], 0
    %8 = vsyncpa [#allocation3], 0
    // Predicated region
    $region2: #{tpu_custom_call.1} parent=1 // pred_check
      _
    $region3: #{tpu_custom_call.1} parent=1 // pred_check_branch
      %10 = sbr.rel (0) target = $region5
    $region4: #{tpu_custom_call.1} parent=1 // pred_region
      %s12 = ssub.s32 16, 16
      %13 = vsyncadd [#allocation4], %s12
      %16 = dma.hbm_to_smem %s0, 16, [#allocation2], [#allocation4]
    $region5: #{tpu_custom_call.1} parent=1 // pred_fallthru
      _
    // Predicated region
    $region6: #{tpu_custom_call.1} parent=1 // pred_check
      _
    $region7: #{tpu_custom_call.1} parent=1 // pred_check_branch
      %18 = sbr.rel (0) target = $region9
    $region8: #{tpu_custom_call.1} parent=1 // pred_region
      _
    $region9: #{tpu_custom_call.1} parent=1 // pred_fallthru
      _
    // Predicated region
    $region10: #{tpu_custom_call.1} parent=1 // pred_check
      _
    $region11: #{tpu_custom_call.1} parent=1 // pred_check_branch
      %20 = sbr.rel (0) target = $region13
    $region12: #{tpu_custom_call.1} parent=1 // pred_region
      %21 = dma.done [#allocation4], 16
    $region13: #{tpu_custom_call.1} parent=1 // pred_fallthru
      _
    %22 = sfence
    %v23 = vld [vmem:[%s1] sm:$0x1]
    %v24 = vlaneseq
    %v25 = vand.u32 %v24, 127
    %v26 = vand.u32 %v25, 1
    %vm27 = vcmp.eq.s32.totalorder %v26, 0
    %s28 = sld [smem:[#allocation2]]
    %s29 = sld [smem:[#allocation2 + $0x3]]
    %v30 = vstv %s28
    %v31 = vstv %s29
    %v32 = vsel %vm27, %v30, %v31
    %s33 = sld [smem:[#allocation2 + $0x2]]
    %s34 = sld [smem:[#allocation2 + $0x1]]
    %v35 = vstv %s33
    %v36 = vstv %s34
    %v37 = vsel %vm27, %v35, %v36
    %s38 = sld [smem:[#allocation2 + $0x4]]
    %s39 = sld [smem:[#allocation2 + $0x5]]
    %v40 = vstv %s38
    %v41 = vstv %s39
    %v42 = vsel %vm27, %v40, %v41
    %s43 = sld [smem:[#allocation2 + $0x6]]
    %s44 = sld [smem:[#allocation2 + $0x9]]
    %v45 = vstv %s43
    %v46 = vstv %s44
    %v47 = vsel %vm27, %v45, %v46
    %s48 = sld [smem:[#allocation2 + $0x8]]
    %s49 = sld [smem:[#allocation2 + $0x7]]
    %v50 = vstv %s48
    %v51 = vstv %s49
    %v52 = vsel %vm27, %v50, %v51
    %s53 = sld [smem:[#allocation2 + $0xa]]
    %s54 = sld [smem:[#allocation2 + $0xb]]
    %v55 = vstv %s53
    %v56 = vstv %s54
    %v57 = vsel %vm27, %v55, %v56
    %v58 = vmul.f32 %v32, %v23
    %59 = vrot.lane.b32.xlu0 %v23, 127
    %v60 = vpop.permute.xlu0 %59
    %61 = vrot.lane.b32.xlu0 %v23, 1
    %v62 = vpop.permute.xlu0 %61
    %v63 = vsel %vm27, %v60, %v62
    %v64 = vmul.f32 %v37, %v63
    %v65 = vadd.f32 %v58, %v64
    %v66 = vadd.f32 %v65, %v42
    %v67 = vmax.f32 %v66, 0.0
    %v68 = vmul.f32 %v47, %v67
    %69 = vrot.lane.b32.xlu0 %v67, 127
    %v70 = vpop.permute.xlu0 %69
    %71 = vrot.lane.b32.xlu0 %v67, 1
    %v72 = vpop.permute.xlu0 %71
    %v73 = vsel %vm27, %v70, %v72
    %v74 = vmul.f32 %v52, %v73
    %v75 = vadd.f32 %v68, %v74
    %v76 = vadd.f32 %v75, %v57
    %77 = vst [vmem:[#allocation5] sm:$0x1] %v76
    // Predicated region
    $region14: #{tpu_custom_call.1} parent=1 // pred_check
      _
    $region15: #{tpu_custom_call.1} parent=1 // pred_check_branch
      %79 = sbr.rel (0) target = $region17
    $region16: #{tpu_custom_call.1} parent=1 // pred_region
      %s81 = ssub.s32 16, 16
      %82 = vsyncadd [#allocation3], %s81
      %s84 = sshll.u32 [#allocation5], 4
      %s85 = int_to_ptr.vmem [resolvable:$true] %s84
      %87 = dma.vmem_to_hbm [thread:$0]  %s85, 16, %s2, [#allocation3]
    $region17: #{tpu_custom_call.1} parent=1 // pred_fallthru
      _
    // Predicated region
    $region18: #{tpu_custom_call.1} parent=1 // pred_check
      _
    $region19: #{tpu_custom_call.1} parent=1 // pred_check_branch
      %89 = sbr.rel (0) target = $region21
    $region20: #{tpu_custom_call.1} parent=1 // pred_region
      %90 = dma.done [#allocation3], 16
    $region21: #{tpu_custom_call.1} parent=1 // pred_fallthru
      _
    %91 = vsyncpa [#allocation3], 1
    %92 = vsyncpa [#allocation4], 1

</llo_original>
